<compile_context>
chip_gen: v7x
topology: tpu7x:2x2x1
jax: 0.10.0
libtpu: 0.0.40
codegen_flags: <defaults>
</compile_context>

<pallas_src>
import functools

import jax
import jax.numpy as jnp
from jax.experimental import pallas as pl
from jax.experimental.pallas import tpu as pltpu


def _round_up(x, m):
    return ((x + m - 1) // m) * m


def _chamfer_kernel(s_ref, o_ref, rowred_ref, acc_ref, *, col_reduce, inv_rows, inv_cols):
    i = pl.program_id(0)          # row-tile index (outer)
    j = pl.program_id(1)          # column-tile index (inner, reduction)
    ni = pl.num_programs(0)
    nj = pl.num_programs(1)

    # Zero the global accumulator once, at the very first grid step.
    @pl.when(jnp.logical_and(i == 0, j == 0))
    def _():
        acc_ref[...] = jnp.zeros_like(acc_ref)

    # (Re-)initialize the per-row running reduce at the start of each row tile.
    @pl.when(j == 0)
    def _():
        init_val = -jnp.inf if col_reduce == "max" else 0.0
        rowred_ref[...] = jnp.full(rowred_ref.shape, init_val, dtype=rowred_ref.dtype)

    tile = s_ref[...]                                            # (tr, tc)
    if col_reduce == "max":
        part = jnp.max(tile, axis=-1, keepdims=True).astype(jnp.float32)
        rowred_ref[...] = jnp.maximum(rowred_ref[...], part)
    else:  # 'mean' over columns: accumulate sums in f32
        part = jnp.sum(tile.astype(jnp.float32), axis=-1, keepdims=True)
        rowred_ref[...] = rowred_ref[...] + part

    # Finished all column tiles for this row tile: fold the row reduces into
    # the scalar accumulator.
    @pl.when(j == nj - 1)
    def _():
        row_vals = rowred_ref[...]
        if col_reduce == "mean":
            row_vals = row_vals * inv_cols
        acc_ref[...] += jnp.sum(row_vals, keepdims=True)          # (1, 1)

    # Very last grid step: write the final scalar (mean over the true rows).
    @pl.when(jnp.logical_and(i == ni - 1, j == nj - 1))
    def _():
        o_ref[...] = acc_ref[...] * inv_rows


def _chamfer_2d(s, *, sim_seq="max_mean", tr=256, tc=1024):
    """max(or mean) over axis 1, then mean over axis 0, of a 2-D matrix -> scalar."""
    assert s.ndim == 2, "Pallas ChamferSimilarity implemented for 2-D inputs"
    assert jnp.issubdtype(s.dtype, jnp.floating)
    N, M = s.shape
    col_reduce = "max" if sim_seq == "max_mean" else "mean"

    # Tile sizes: keep (8, 128) alignment, clamp to the (rounded-up) array size.
    tr_eff = min(tr, _round_up(N, 8))
    tc_eff = min(tc, _round_up(M, 128))
    Np = _round_up(N, tr_eff)
    Mp = _round_up(M, tc_eff)

    sp = s
    if Mp != M:
        # Column padding must not affect the per-row reduce.
        col_pad = float("-inf") if col_reduce == "max" else 0.0
        sp = jnp.pad(sp, ((0, 0), (0, Mp - M)), constant_values=col_pad)
    if Np != N:
        # Zero rows reduce to 0 (max or mean) and contribute nothing to the sum;
        # the final mean divides by the true N.
        sp = jnp.pad(sp, ((0, Np - N), (0, 0)), constant_values=0.0)

    kernel = functools.partial(
        _chamfer_kernel,
        col_reduce=col_reduce,
        inv_rows=1.0 / N,
        inv_cols=1.0 / M,
    )

    grid = (Np // tr_eff, Mp // tc_eff)
    out = pl.pallas_call(
        kernel,
        out_shape=jax.ShapeDtypeStruct((1, 1), jnp.float32),
        grid_spec=pltpu.PrefetchScalarGridSpec(
            num_scalar_prefetch=0,
            grid=grid,
            in_specs=[pl.BlockSpec((tr_eff, tc_eff), lambda i, j: (i, j))],
            out_specs=pl.BlockSpec((1, 1), lambda i, j: (0, 0)),
            scratch_shapes=[
                pltpu.VMEM((tr_eff, 1), jnp.float32),   # per-row running reduce
                pltpu.VMEM((1, 1), jnp.float32),        # global scalar accumulator
            ],
        ),
        compiler_params=pltpu.CompilerParams(
            # Output block is resident across both grid axes (pure reduction),
            # so both axes must be "arbitrary".
            dimension_semantics=("arbitrary", "arbitrary"),
        ),
        cost_estimate=pl.CostEstimate(
            flops=2 * N * M,
            transcendentals=0,
            bytes_accessed=Np * Mp * s.dtype.itemsize + 4,
        ),
    )(sp)
    return out[0, 0]


def chamfer_similarity(s, *, symmetric=False, sim_seq="max_mean", tr=256, tc=1024):
    """Forward pass of ChamferSimilarity (axes=[1, 0]) for a 2-D similarity matrix."""
    if symmetric:
        a = _chamfer_2d(s, sim_seq=sim_seq, tr=tr, tc=tc)
        b = _chamfer_2d(s.T, sim_seq=sim_seq, tr=tr, tc=tc)
        return ((a + b) * 0.5).astype(s.dtype)
    return _chamfer_2d(s, sim_seq=sim_seq, tr=tr, tc=tc).astype(s.dtype)


def chamfer_reference(s, *, symmetric=False, sim_seq="max_mean"):
    def one_dir(x):
        if sim_seq == "max_mean":
            r = jnp.max(x, axis=1)
        else:
            r = jnp.mean(x, axis=1)
        return jnp.mean(r, axis=0)

    if symmetric:
        return ((one_dir(s) + one_dir(s.T)) * 0.5).astype(s.dtype)
    return one_dir(s).astype(s.dtype)


if __name__ == "__main__":
    key = jax.random.PRNGKey(0)
    k1, k2, k3 = jax.random.split(key, 3)

    # Small similarity matrices (query frames x target frames), as the module's
    # default axes=[1, 0] usage implies.
    s1 = jax.random.normal(k1, (24, 40), dtype=jnp.float32)     # non-divisible -> padding path
    s2 = jax.random.normal(k2, (64, 256), dtype=jnp.float32)    # divisible, single tile
    s3 = jax.random.normal(k3, (40, 300), dtype=jnp.float32)    # multi-tile via small tr/tc

    tests = [
        (s1, dict(symmetric=False, sim_seq="max_mean")),
        (s1, dict(symmetric=True, sim_seq="max_mean")),
        (s2, dict(symmetric=False, sim_seq="mean_mean")),
        (s3, dict(symmetric=False, sim_seq="max_mean", tr=16, tc=128)),
        (s3, dict(symmetric=True, sim_seq="mean_mean", tr=16, tc=128)),
    ]

    for s, cfg in tests:
        out = jax.block_until_ready(chamfer_similarity(s, **cfg))
        ref_cfg = {k: v for k, v in cfg.items() if k in ("symmetric", "sim_seq")}
        ref = chamfer_reference(s, **ref_cfg)
        assert out.shape == ()
        assert jnp.allclose(out, ref, atol=1e-5, rtol=1e-5), (cfg, out, ref)

    print("KERNEL_OK")
</pallas_src>

<mosaic_0001>
module attributes {stable_mosaic.version = 11 : i64} {
  func.func @_chamfer_kernel(%arg0: i32, %arg1: i32, %arg2: memref<24x128xf32, #tpu.memory_space<vmem>>, %arg3: memref<1x1xf32, #tpu.memory_space<vmem>>, %arg4: memref<24x1xf32, #tpu.memory_space<vmem>>, %arg5: memref<1x1xf32, #tpu.memory_space<vmem>>) attributes {dimension_semantics = [#tpu.dimension_semantics<arbitrary>, #tpu.dimension_semantics<arbitrary>], iteration_bounds = array<i64: 1, 1>, scalar_prefetch = 0 : i64, scratch_operands = 2 : i64, tpu.core_type = #tpu.core_type<tc>, window_params = [{transform_indices = @transform_0, window_bounds = array<i64: 24, 128>}, {pipeline_mode = #tpu.pipeline_mode<synchronous>, transform_indices = @transform_1, window_bounds = array<i64: 1, 1>}]} {
    %c0_i32 = arith.constant 0 : i32
    %0 = arith.cmpi eq, %arg0, %c0_i32 : i32
    %c0_i32_0 = arith.constant 0 : i32
    %1 = arith.cmpi eq, %arg1, %c0_i32_0 : i32
    %2 = arith.andi %0, %1 : i1
    %3 = arith.extui %2 : i1 to i32
    %c0_i32_1 = arith.constant 0 : i32
    %4 = arith.cmpi ne, %3, %c0_i32_1 : i32
    scf.if %4 {
      %cst_14 = arith.constant 0.000000e+00 : f32
      %22 = vector.broadcast %cst_14 : f32 to vector<1x1xf32>
      %c0_15 = arith.constant 0 : index
      %c0_16 = arith.constant 0 : index
      %23 = vector.load %arg5[%c0_15, %c0_16] : memref<1x1xf32, #tpu.memory_space<vmem>>, vector<1x1xf32>
      tpu.vector_store %arg5[%c0_15, %c0_16], %22 {strides = array<i32>} : memref<1x1xf32, #tpu.memory_space<vmem>>, vector<1x1xf32>,
    } else {
    }
    %c0_i32_2 = arith.constant 0 : i32
    %5 = arith.cmpi eq, %arg1, %c0_i32_2 : i32
    %6 = arith.extui %5 : i1 to i32
    %c0_i32_3 = arith.constant 0 : i32
    %7 = arith.cmpi ne, %6, %c0_i32_3 : i32
    scf.if %7 {
      %cst_14 = arith.constant 0xFF800000 : f32
      %22 = vector.broadcast %cst_14 : f32 to vector<24x1xf32>
      %c0_15 = arith.constant 0 : index
      %c0_16 = arith.constant 0 : index
      %23 = vector.load %arg4[%c0_15, %c0_16] : memref<24x1xf32, #tpu.memory_space<vmem>>, vector<24x1xf32>
      tpu.vector_store %arg4[%c0_15, %c0_16], %22 {strides = array<i32>} : memref<24x1xf32, #tpu.memory_space<vmem>>, vector<24x1xf32>,
    } else {
    }
    %c0 = arith.constant 0 : index
    %c0_4 = arith.constant 0 : index
    %8 = vector.load %arg2[%c0, %c0_4] : memref<24x128xf32, #tpu.memory_space<vmem>>, vector<24x128xf32>
    %cst = arith.constant dense<0xFF800000> : vector<24xf32>
    %9 = vector.multi_reduction <maximumf>, %8, %cst [1] : vector<24x128xf32> to vector<24xf32>
    %10 = vector.shape_cast %9 : vector<24xf32> to vector<24x1xf32>
    %c0_5 = arith.constant 0 : index
    %c0_6 = arith.constant 0 : index
    %11 = vector.load %arg4[%c0_5, %c0_6] : memref<24x1xf32, #tpu.memory_space<vmem>>, vector<24x1xf32>
    %12 = arith.maximumf %11, %10 : vector<24x1xf32>
    %c0_7 = arith.constant 0 : index
    %c0_8 = arith.constant 0 : index
    %13 = vector.load %arg4[%c0_7, %c0_8] : memref<24x1xf32, #tpu.memory_space<vmem>>, vector<24x1xf32>
    tpu.vector_store %arg4[%c0_7, %c0_8], %12 {strides = array<i32>} : memref<24x1xf32, #tpu.memory_space<vmem>>, vector<24x1xf32>,
    %c0_i32_9 = arith.constant 0 : i32
    %14 = arith.cmpi eq, %arg1, %c0_i32_9 : i32
    %15 = arith.extui %14 : i1 to i32
    %c0_i32_10 = arith.constant 0 : i32
    %16 = arith.cmpi ne, %15, %c0_i32_10 : i32
    scf.if %16 {
      %c0_14 = arith.constant 0 : index
      %c0_15 = arith.constant 0 : index
      %22 = vector.load %arg4[%c0_14, %c0_15] : memref<24x1xf32, #tpu.memory_space<vmem>>, vector<24x1xf32>
      %c0_16 = arith.constant 0 : index
      %c0_17 = arith.constant 0 : index
      %23 = vector.load %arg5[%c0_16, %c0_17] : memref<1x1xf32, #tpu.memory_space<vmem>>, vector<1x1xf32>
      %24 = vector.shape_cast %22 : vector<24x1xf32> to vector<1x24x1xf32>
      %cst_18 = arith.constant dense<0.000000e+00> : vector<1xf32>
      %25 = vector.multi_reduction <add>, %24, %cst_18 [1, 2] : vector<1x24x1xf32> to vector<1xf32>
      %26 = vector.shape_cast %25 : vector<1xf32> to vector<1x1x1xf32>
      %27 = vector.extract %26[0, 0, 0] : f32 from vector<1x1x1xf32>
      %28 = vector.broadcast %27 : f32 to vector<1x1xf32>
      %29 = arith.addf %23, %28 : vector<1x1xf32>
      %c0_19 = arith.constant 0 : index
      %c0_20 = arith.constant 0 : index
      %30 = vector.load %arg5[%c0_19, %c0_20] : memref<1x1xf32, #tpu.memory_space<vmem>>, vector<1x1xf32>
      tpu.vector_store %arg5[%c0_19, %c0_20], %29 {strides = array<i32>} : memref<1x1xf32, #tpu.memory_space<vmem>>, vector<1x1xf32>,
    } else {
    }
    %c0_i32_11 = arith.constant 0 : i32
    %17 = arith.cmpi eq, %arg0, %c0_i32_11 : i32
    %c0_i32_12 = arith.constant 0 : i32
    %18 = arith.cmpi eq, %arg1, %c0_i32_12 : i32
    %19 = arith.andi %17, %18 : i1
    %20 = arith.extui %19 : i1 to i32
    %c0_i32_13 = arith.constant 0 : i32
    %21 = arith.cmpi ne, %20, %c0_i32_13 : i32
    scf.if %21 {
      %c0_14 = arith.constant 0 : index
      %c0_15 = arith.constant 0 : index
      %22 = vector.load %arg5[%c0_14, %c0_15] : memref<1x1xf32, #tpu.memory_space<vmem>>, vector<1x1xf32>
      %cst_16 = arith.constant 0.0416666679 : f32
      %23 = vector.broadcast %cst_16 : f32 to vector<1x1xf32>
      %24 = arith.mulf %22, %23 : vector<1x1xf32>
      %c0_17 = arith.constant 0 : index
      %c0_18 = arith.constant 0 : index
      %25 = vector.load %arg3[%c0_17, %c0_18] : memref<1x1xf32, #tpu.memory_space<vmem>>, vector<1x1xf32>
      tpu.vector_store %arg3[%c0_17, %c0_18], %24 {strides = array<i32>} : memref<1x1xf32, #tpu.memory_space<vmem>>, vector<1x1xf32>,
    } else {
    }
    return
  }
  func.func @transform_0(%arg0: i32, %arg1: i32) -> (i32, i32) {
    %c0_i32 = arith.constant 0 : i32
    return %arg0, %arg1 : i32, i32
  }
  func.func @transform_1(%arg0: i32, %arg1: i32) -> (i32, i32) {
    %c0_i32 = arith.constant 0 : i32
    %c0_i32_0 = arith.constant 0 : i32
    %c0_i32_1 = arith.constant 0 : i32
    return %c0_i32, %c0_i32_0 : i32, i32
  }
}

</mosaic_0001>

<llo_original>
// kernel: tpu_custom_call.1
$region0: #{tpu_custom_call.1}
  #allocation0 [shape = 'u32[]', space=smem, size = 0x4, offset = 0x4, fixed_abs, tag = 'smem constant byte address 0x4 - core index']
  #allocation1 [shape = 'u32[144,128]{1,0:T(1,128)}', space=vmem, size = 0x12000, scoped, tag = 'internal scratch']
  #allocation2 [shape = 'f32[24,1]{1,0:T(8,128)}', space=vmem, size = 0x3000, scoped, tag = 'scratch operand']
  #allocation3 [shape = 'f32[1,1]{1,0:T(1,128)}', space=vmem, size = 0x200, scoped, tag = 'scratch operand']
  %s0 = inlined_call_operand.hbm [shape: f32[24,128], index: 0, kind: input, shape index: {}]
  %s1 = inlined_call_operand.hbm [shape: f32[1,1], index: 1, kind: output, shape index: {}]
  %s2 = sld [smem:[#allocation0]]
  $region34: #{tpu_custom_call.1} parent=0
    _
  %s4 = ssub.s32 1, %s2
  %s5 = scalar_select 0, %s4, %s2
  $region1: #{tpu_custom_call.1} parent=0
    #allocation4 [shape = 'u8[12288]{0}', space=vmem, size = 0x3000, scoped, tag = 'input window, operand 0, single buffered']
    #allocation5 [shape = 's32[1]{0}', space=sflag, size = 0x4, scoped, tag = 'scoped memory for tpu_custom_call.1']
    #allocation6 [shape = 's32[1]{0}', space=sflag, size = 0x4, scoped, tag = 'scoped memory for tpu_custom_call.1']
    #allocation7 [shape = 'u8[512]{0}', space=vmem, size = 0x400, scoped, tag = 'output window, operand 0, single buffered']
    %6 = vsyncpa [#allocation5], 0
    %7 = vsyncpa [#allocation6], 0
    // Predicated region
    $region2: #{tpu_custom_call.1} parent=1 // pred_check
      _
    $region3: #{tpu_custom_call.1} parent=1 // pred_check_branch
      %9 = sbr.rel (0) target = $region5
    $region4: #{tpu_custom_call.1} parent=1 // pred_region
      %s11 = ssub.s32 384, 384
      %12 = vsyncadd [#allocation5], %s11
      %s13 = sshll.u32 [#allocation4], 4
      %s14 = int_to_ptr.vmem [resolvable:$true] %s13
      %19 = dma.hbm_to_vmem [thread:$0]  %s0, 384, %s14, [#allocation5], 128, 128, 8
    $region5: #{tpu_custom_call.1} parent=1 // pred_fallthru
      _
    // Predicated region
    $region6: #{tpu_custom_call.1} parent=1 // pred_check
      _
    $region7: #{tpu_custom_call.1} parent=1 // pred_check_branch
      %21 = sbr.rel (0) target = $region9
    $region8: #{tpu_custom_call.1} parent=1 // pred_region
      %22 = dma.done [#allocation5], 384
    $region9: #{tpu_custom_call.1} parent=1 // pred_fallthru
      _
    %p23 = scmp.eq.s32.totalorder 0, 0
    %p24 = scmp.eq.s32.totalorder 0, 0
    %p25 = pnand %p23, %p24
    %p26 = pneg %p25
    // Predicated region
    $region10: #{tpu_custom_call.1} parent=1 // pred_check
      _
    $region11: #{tpu_custom_call.1} parent=1 // pred_check_branch
      %28 = sbr.rel (%p25) target = $region13
    $region12: #{tpu_custom_call.1} parent=1 // pred_region
      %vm29 = vcmask 0
      %30 = vst.msk [vmem:[#allocation3] sm:$0x1] %vm29, 0.0
    $region13: #{tpu_custom_call.1} parent=1 // pred_fallthru
      _
    // Predicated region
    $region14: #{tpu_custom_call.1} parent=1 // pred_check
      %p31 = pneg %p24
    $region15: #{tpu_custom_call.1} parent=1 // pred_check_branch
      %33 = sbr.rel (%p31) target = $region17
    $region16: #{tpu_custom_call.1} parent=1 // pred_region
      %vm34 = vcmask 7168
      %35 = vst.msk [vmem:[#allocation2] sm:$0xff] %vm34, -inf
      %36 = vst.msk [vmem:[#allocation2 + $0x8] sm:$0xff] %vm34, -inf
      %37 = vst.msk [vmem:[#allocation2 + $0x10] sm:$0xff] %vm34, -inf
    $region17: #{tpu_custom_call.1} parent=1 // pred_fallthru
      _
    %v38 = vld [vmem:[#allocation4] sm:$0xff]
    %v39 = vld [vmem:[#allocation4 + $0x8] sm:$0xff]
    %v40 = vld [vmem:[#allocation4 + $0x10] sm:$0xff]
    %41 = vmax.xlane.f32.xlu0 %v38
    %v42 = vpop.xlane.xlu0 %41
    %43 = vmax.xlane.f32.xlu0 %v39
    %v44 = vpop.xlane.xlu0 %43
    %45 = vmax.xlane.f32.xlu0 %v40
    %v46 = vpop.xlane.xlu0 %45
    %v47 = vld [vmem:[#allocation2] sm:$0xff]
    %v48 = vld [vmem:[#allocation2 + $0x8] sm:$0xff]
    %v49 = vld [vmem:[#allocation2 + $0x10] sm:$0xff]
    %v50 = vmax.f32 %v47, %v42
    %v51 = vmax.f32 %v48, %v44
    %v52 = vmax.f32 %v49, %v46
    %vm53 = vcmask 7168
    %54 = vst.msk [vmem:[#allocation2] sm:$0xff] %vm53, %v50
    %55 = vst.msk [vmem:[#allocation2 + $0x8] sm:$0xff] %vm53, %v51
    %56 = vst.msk [vmem:[#allocation2 + $0x10] sm:$0xff] %vm53, %v52
    // Predicated region
    $region18: #{tpu_custom_call.1} parent=1 // pred_check
      %p57 = pneg %p24
    $region19: #{tpu_custom_call.1} parent=1 // pred_check_branch
      %59 = sbr.rel (%p57) target = $region21
    $region20: #{tpu_custom_call.1} parent=1 // pred_region
      %v60 = vld [vmem:[#allocation2] sm:$0xff]
      %v61 = vld [vmem:[#allocation2 + $0x8] sm:$0xff]
      %v62 = vld [vmem:[#allocation2 + $0x10] sm:$0xff]
      %v63 = vld [vmem:[#allocation3] sm:$0x1]
      %v64 = vsel %vm53, %v60, 0.0
      %v65 = vsel %vm53, %v61, 0.0
      %v66 = vadd.f32 %v64, %v65
      %v67 = vsel %vm53, %v62, 0.0
      %v68 = vadd.f32 %v66, %v67
      %69 = vadd.xlane.f32.xlu0 %v68
      %v70 = vpop.xlane.xlu0 %69
      %v71 = vrot.slane %v70, 4
      %v72 = vadd.f32 %v70, %v71
      %v73 = vrot.slane %v72, 2
      %v74 = vadd.f32 %v72, %v73
      %v75 = vrot.slane %v74, 1
      %v76 = vadd.f32 %v74, %v75
      %s77 = vtos %v76
      %v78 = vstv %s77
      %v79 = vadd.f32 %v63, %v78
      %vm80 = vcmask 0
      %81 = vst.msk [vmem:[#allocation3] sm:$0x1] %vm80, %v79
    $region21: #{tpu_custom_call.1} parent=1 // pred_fallthru
      _
    // Predicated region
    $region22: #{tpu_custom_call.1} parent=1 // pred_check
      _
    $region23: #{tpu_custom_call.1} parent=1 // pred_check_branch
      %83 = sbr.rel (%p25) target = $region25
    $region24: #{tpu_custom_call.1} parent=1 // pred_region
      %v84 = vld [vmem:[#allocation3] sm:$0x1]
      %v85 = vmul.f32 %v84, 0.041666668
      %vm86 = vcmask 0
      %87 = vst.msk [vmem:[#allocation7] sm:$0x1] %vm86, %v85
    $region25: #{tpu_custom_call.1} parent=1 // pred_fallthru
      _
    // Predicated region
    $region26: #{tpu_custom_call.1} parent=1 // pred_check
      _
    $region27: #{tpu_custom_call.1} parent=1 // pred_check_branch
      %89 = sbr.rel (0) target = $region29
    $region28: #{tpu_custom_call.1} parent=1 // pred_region
      %s91 = ssub.s32 16, 16
      %92 = vsyncadd [#allocation6], %s91
      %s94 = sshll.u32 [#allocation7], 4
      %s95 = int_to_ptr.vmem [resolvable:$true] %s94
      %97 = dma.vmem_to_hbm [thread:$0]  %s95, 16, %s1, [#allocation6]
    $region29: #{tpu_custom_call.1} parent=1 // pred_fallthru
      _
    // Predicated region
    $region30: #{tpu_custom_call.1} parent=1 // pred_check
      _
    $region31: #{tpu_custom_call.1} parent=1 // pred_check_branch
      %99 = sbr.rel (0) target = $region33
    $region32: #{tpu_custom_call.1} parent=1 // pred_region
      %100 = dma.done [#allocation6], 16
    $region33: #{tpu_custom_call.1} parent=1 // pred_fallthru
      _
    %101 = vsyncpa [#allocation5], 1
    %102 = vsyncpa [#allocation6], 1

</llo_original>
